<compile_context>
chip_gen: v5e
topology: v5e:2x2
jax: 0.10.0
libtpu: 0.0.40
codegen_flags: <defaults>
</compile_context>

<pallas_src>
import jax
import jax.numpy as jnp
from jax.experimental import pallas as pl
from jax.experimental.pallas import tpu as pltpu


def _ordinal_log_loss_kernel(lm_ref, pred_ref, tgt_ref, out_ref):
    # lm_ref:   (C, C) f32 in SMEM (scalar reads)
    # pred_ref: (C, T) f32 logits (class on sublanes, samples on lanes)
    # tgt_ref:  (1, T) i32 class ids
    # out_ref:  (1, T) f32 per-sample losses
    logits = pred_ref[...].astype(jnp.float32)
    c = logits.shape[0]

    # Softmax along the class (sublane) axis — matches nn.Softmax() on (N, C) inputs.
    m = jnp.max(logits, axis=0, keepdims=True)            # (1, T)
    e = jnp.exp(logits - m)                                # (C, T)
    denom = jnp.sum(e, axis=0, keepdims=True)              # (1, T)
    # Exact reciprocal on a single (1, T) row (keeps 1e-5 accuracy; the divide is 1/C
    # of the elementwise work so it is not the binding unit).
    inv = pl.reciprocal(denom, approx=False)
    p = e * inv                                            # (C, T)

    # -log(1 - p + 1e-9)
    log_p = -jnp.log(1.0 - p + 1e-9)                       # (C, T)

    # Gather loss_matrix[target] and reduce over classes, fully on the VPU:
    #   loss[n] = sum_j log_p[j, n] * loss_matrix[target[n], j]
    # Unrolled over k (target class) and j (class axis): C*C scalar-vector FMAs
    # on (1, T) rows + C selects. No MXU, no one-hot temporaries.
    tgt = tgt_ref[...]                                     # (1, T) int32
    loss = jnp.zeros(out_ref.shape, jnp.float32)
    for k in range(c):
        s_k = jnp.zeros(out_ref.shape, jnp.float32)
        for j in range(c):
            s_k = s_k + lm_ref[k, j] * log_p[j:j + 1, :]
        loss = loss + jnp.where(tgt == k, s_k, 0.0)
    out_ref[...] = loss


def ordinal_log_loss(predicted, target, loss_matrix, *, tile_n=4096):
    """predicted: (N, C) float, target: (N,) int, loss_matrix: (C, C) float.

    Returns per-sample losses of shape (N, 1), matching the PyTorch module.
    """
    n, c = predicted.shape

    # Lane-dense tiling over N: tile must be a multiple of 128 lanes.
    tile_n = max(128, (int(tile_n) // 128) * 128)
    tile_n = min(tile_n, max(128, pl.cdiv(n, 128) * 128))
    n_pad = pl.cdiv(n, tile_n) * tile_n

    # Class-major layout: samples on the lane axis.
    pred_t = jnp.transpose(predicted.astype(jnp.float32))          # (C, N)
    tgt = target.astype(jnp.int32).reshape(1, n)                   # (1, N)
    if n_pad != n:
        # Pad the tail tile; padded columns are computed but sliced off below,
        # so no in-kernel masking is required (zeros -> finite softmax, no NaNs).
        pred_t = jnp.pad(pred_t, ((0, 0), (0, n_pad - n)))
        tgt = jnp.pad(tgt, ((0, 0), (0, n_pad - n)))
    lm = loss_matrix.astype(jnp.float32)                           # (C, C)

    out = pl.pallas_call(
        _ordinal_log_loss_kernel,
        out_shape=jax.ShapeDtypeStruct((1, n_pad), jnp.float32),
        grid=(n_pad // tile_n,),
        in_specs=[
            # Small (C, C) weight table: whole array in SMEM, read as scalars.
            pl.BlockSpec(memory_space=pltpu.MemorySpace.SMEM),
            pl.BlockSpec((c, tile_n), lambda i: (0, i)),
            pl.BlockSpec((1, tile_n), lambda i: (0, i)),
        ],
        out_specs=pl.BlockSpec((1, tile_n), lambda i: (0, i)),
        compiler_params=pltpu.CompilerParams(
            # Row tiles are independent -> shard across v7x's 2 TensorCores.
            dimension_semantics=("parallel",)),
    )(lm, pred_t, tgt)

    return out[:, :n].reshape(n, 1)


def _reference(predicted, target, loss_matrix):
    p = jax.nn.softmax(predicted.astype(jnp.float32), axis=1)
    log_p = -jnp.log(1.0 - p + 1e-9)
    w = loss_matrix[target]
    return jnp.sum(log_p * w, axis=1).reshape(-1, 1)


if __name__ == "__main__":
    # Deterministic loss_matrix from the module's __init__ (alpha = 1.0).
    alpha = 1.0
    loss_matrix = jnp.array(
        [[0.0, 1.0, 1.0, 1.0, 1.0],
         [1.0, 0.0, 0.25, 0.5, 0.5],
         [1.0, 0.25, 0.0, 0.5, 0.5],
         [1.0, 0.5, 0.5, 0.0, 0.5],
         [1.0, 0.5, 0.5, 0.5, 0.0]], dtype=jnp.float32) ** alpha

    C = 5
    key = jax.random.PRNGKey(0)

    # Small shape matching the module's forward signature.
    N = 8
    k_pred, k_tgt, key = jax.random.split(key, 3)
    predicted = jax.random.normal(k_pred, (N, C), dtype=jnp.float32)
    target = jax.random.randint(k_tgt, (N,), 0, C, dtype=jnp.int32)

    out = jax.block_until_ready(ordinal_log_loss(predicted, target, loss_matrix))
    ref = _reference(predicted, target, loss_matrix)
    assert out.shape == (N, 1)
    assert jnp.allclose(out, ref, atol=1e-5, rtol=1e-5), (out, ref)

    # Exercise multi-tile grid + tail padding path (N not a multiple of the tile).
    N2 = 300
    k_pred2, k_tgt2, key = jax.random.split(key, 3)
    predicted2 = jax.random.normal(k_pred2, (N2, C), dtype=jnp.float32)
    target2 = jax.random.randint(k_tgt2, (N2,), 0, C, dtype=jnp.int32)

    out2 = jax.block_until_ready(
        ordinal_log_loss(predicted2, target2, loss_matrix, tile_n=128))
    ref2 = _reference(predicted2, target2, loss_matrix)
    assert out2.shape == (N2, 1)
    assert jnp.allclose(out2, ref2, atol=1e-5, rtol=1e-5), (out2, ref2)

    print("KERNEL_OK")
</pallas_src>

<mosaic_0001>
module attributes {stable_mosaic.version = 11 : i64} {
  func.func @_ordinal_log_loss_kernel(%arg0: i32, %arg1: memref<5x5xf32, #tpu.memory_space<smem>>, %arg2: memref<5x128xf32, #tpu.memory_space<vmem>>, %arg3: memref<1x128xi32, #tpu.memory_space<vmem>>, %arg4: memref<1x128xf32, #tpu.memory_space<vmem>>) attributes {dimension_semantics = [#tpu.dimension_semantics<parallel>], iteration_bounds = array<i64: 1>, scalar_prefetch = 0 : i64, scratch_operands = 0 : i64, tpu.core_type = #tpu.core_type<tc>, window_params = [{transform_indices = @transform_0, window_bounds = array<i64: 5, 5>}, {transform_indices = @transform_1, window_bounds = array<i64: 5, 128>}, {transform_indices = @transform_2, window_bounds = array<i64: 1, 128>}, {transform_indices = @transform_3, window_bounds = array<i64: 1, 128>}]} {
    %c0 = arith.constant 0 : index
    %c0_0 = arith.constant 0 : index
    %0 = vector.load %arg2[%c0, %c0_0] : memref<5x128xf32, #tpu.memory_space<vmem>>, vector<5x128xf32>
    %cst = arith.constant dense<0xFF800000> : vector<128xf32>
    %1 = vector.multi_reduction <maximumf>, %0, %cst [0] : vector<5x128xf32> to vector<128xf32>
    %2 = vector.shape_cast %1 : vector<128xf32> to vector<1x128xf32>
    %3 = vector.broadcast %2 : vector<1x128xf32> to vector<5x128xf32>
    %4 = arith.subf %0, %3 : vector<5x128xf32>
    %5 = math.exp %4 : vector<5x128xf32>
    %cst_1 = arith.constant dense<0.000000e+00> : vector<128xf32>
    %6 = vector.multi_reduction <add>, %5, %cst_1 [0] : vector<5x128xf32> to vector<128xf32>
    %7 = vector.shape_cast %6 : vector<128xf32> to vector<1x128xf32>
    %8 = tpu.reciprocal %7 : vector<1x128xf32> -> vector<1x128xf32>
    %9 = vector.broadcast %8 : vector<1x128xf32> to vector<5x128xf32>
    %10 = arith.mulf %5, %9 : vector<5x128xf32>
    %cst_2 = arith.constant 1.000000e+00 : f32
    %11 = vector.broadcast %cst_2 : f32 to vector<5x128xf32>
    %12 = arith.subf %11, %10 : vector<5x128xf32>
    %cst_3 = arith.constant 9.99999971E-10 : f32
    %13 = vector.broadcast %cst_3 : f32 to vector<5x128xf32>
    %14 = arith.addf %12, %13 : vector<5x128xf32>
    %15 = math.log %14 : vector<5x128xf32>
    %cst_4 = arith.constant 0.000000e+00 : f32
    %16 = vector.broadcast %cst_4 : f32 to vector<5x128xf32>
    %17 = arith.subf %16, %15 : vector<5x128xf32>
    %c0_5 = arith.constant 0 : index
    %c0_6 = arith.constant 0 : index
    %18 = vector.load %arg3[%c0_5, %c0_6] : memref<1x128xi32, #tpu.memory_space<vmem>>, vector<1x128xi32>
    %cst_7 = arith.constant 0.000000e+00 : f32
    %19 = vector.broadcast %cst_7 : f32 to vector<1x128xf32>
    %cst_8 = arith.constant 0.000000e+00 : f32
    %20 = vector.broadcast %cst_8 : f32 to vector<1x128xf32>
    %c0_9 = arith.constant 0 : index
    %c0_10 = arith.constant 0 : index
    %21 = memref.load %arg1[%c0_9, %c0_10] : memref<5x5xf32, #tpu.memory_space<smem>>
    %22 = vector.extract_strided_slice %17 {offsets = [0, 0], sizes = [1, 128], strides = [1, 1]} : vector<5x128xf32> to vector<1x128xf32>
    %23 = vector.broadcast %21 : f32 to vector<1x128xf32>
    %24 = arith.mulf %23, %22 : vector<1x128xf32>
    %25 = arith.addf %20, %24 : vector<1x128xf32>
    %c0_11 = arith.constant 0 : index
    %c1 = arith.constant 1 : index
    %26 = memref.load %arg1[%c0_11, %c1] : memref<5x5xf32, #tpu.memory_space<smem>>
    %27 = vector.extract_strided_slice %17 {offsets = [1, 0], sizes = [1, 128], strides = [1, 1]} : vector<5x128xf32> to vector<1x128xf32>
    %28 = vector.broadcast %26 : f32 to vector<1x128xf32>
    %29 = arith.mulf %28, %27 : vector<1x128xf32>
    %30 = arith.addf %25, %29 : vector<1x128xf32>
    %c0_12 = arith.constant 0 : index
    %c2 = arith.constant 2 : index
    %31 = memref.load %arg1[%c0_12, %c2] : memref<5x5xf32, #tpu.memory_space<smem>>
    %32 = vector.extract_strided_slice %17 {offsets = [2, 0], sizes = [1, 128], strides = [1, 1]} : vector<5x128xf32> to vector<1x128xf32>
    %33 = vector.broadcast %31 : f32 to vector<1x128xf32>
    %34 = arith.mulf %33, %32 : vector<1x128xf32>
    %35 = arith.addf %30, %34 : vector<1x128xf32>
    %c0_13 = arith.constant 0 : index
    %c3 = arith.constant 3 : index
    %36 = memref.load %arg1[%c0_13, %c3] : memref<5x5xf32, #tpu.memory_space<smem>>
    %37 = vector.extract_strided_slice %17 {offsets = [3, 0], sizes = [1, 128], strides = [1, 1]} : vector<5x128xf32> to vector<1x128xf32>
    %38 = vector.broadcast %36 : f32 to vector<1x128xf32>
    %39 = arith.mulf %38, %37 : vector<1x128xf32>
    %40 = arith.addf %35, %39 : vector<1x128xf32>
    %c0_14 = arith.constant 0 : index
    %c4 = arith.constant 4 : index
    %41 = memref.load %arg1[%c0_14, %c4] : memref<5x5xf32, #tpu.memory_space<smem>>
    %42 = vector.extract_strided_slice %17 {offsets = [4, 0], sizes = [1, 128], strides = [1, 1]} : vector<5x128xf32> to vector<1x128xf32>
    %43 = vector.broadcast %41 : f32 to vector<1x128xf32>
    %44 = arith.mulf %43, %42 : vector<1x128xf32>
    %45 = arith.addf %40, %44 : vector<1x128xf32>
    %c0_i32 = arith.constant 0 : i32
    %46 = vector.broadcast %c0_i32 : i32 to vector<1x128xi32>
    %47 = arith.cmpi eq, %18, %46 : vector<1x128xi32>
    %cst_15 = arith.constant 0.000000e+00 : f32
    %48 = vector.broadcast %cst_15 : f32 to vector<1x128xf32>
    %49 = arith.select %47, %45, %48 : vector<1x128xi1>, vector<1x128xf32>
    %50 = arith.addf %19, %49 : vector<1x128xf32>
    %cst_16 = arith.constant 0.000000e+00 : f32
    %51 = vector.broadcast %cst_16 : f32 to vector<1x128xf32>
    %c1_17 = arith.constant 1 : index
    %c0_18 = arith.constant 0 : index
    %52 = memref.load %arg1[%c1_17, %c0_18] : memref<5x5xf32, #tpu.memory_space<smem>>
    %53 = vector.extract_strided_slice %17 {offsets = [0, 0], sizes = [1, 128], strides = [1, 1]} : vector<5x128xf32> to vector<1x128xf32>
    %54 = vector.broadcast %52 : f32 to vector<1x128xf32>
    %55 = arith.mulf %54, %53 : vector<1x128xf32>
    %56 = arith.addf %51, %55 : vector<1x128xf32>
    %c1_19 = arith.constant 1 : index
    %c1_20 = arith.constant 1 : index
    %57 = memref.load %arg1[%c1_19, %c1_20] : memref<5x5xf32, #tpu.memory_space<smem>>
    %58 = vector.extract_strided_slice %17 {offsets = [1, 0], sizes = [1, 128], strides = [1, 1]} : vector<5x128xf32> to vector<1x128xf32>
    %59 = vector.broadcast %57 : f32 to vector<1x128xf32>
    %60 = arith.mulf %59, %58 : vector<1x128xf32>
    %61 = arith.addf %56, %60 : vector<1x128xf32>
    %c1_21 = arith.constant 1 : index
    %c2_22 = arith.constant 2 : index
    %62 = memref.load %arg1[%c1_21, %c2_22] : memref<5x5xf32, #tpu.memory_space<smem>>
    %63 = vector.extract_strided_slice %17 {offsets = [2, 0], sizes = [1, 128], strides = [1, 1]} : vector<5x128xf32> to vector<1x128xf32>
    %64 = vector.broadcast %62 : f32 to vector<1x128xf32>
    %65 = arith.mulf %64, %63 : vector<1x128xf32>
    %66 = arith.addf %61, %65 : vector<1x128xf32>
    %c1_23 = arith.constant 1 : index
    %c3_24 = arith.constant 3 : index
    %67 = memref.load %arg1[%c1_23, %c3_24] : memref<5x5xf32, #tpu.memory_space<smem>>
    %68 = vector.extract_strided_slice %17 {offsets = [3, 0], sizes = [1, 128], strides = [1, 1]} : vector<5x128xf32> to vector<1x128xf32>
    %69 = vector.broadcast %67 : f32 to vector<1x128xf32>
    %70 = arith.mulf %69, %68 : vector<1x128xf32>
    %71 = arith.addf %66, %70 : vector<1x128xf32>
    %c1_25 = arith.constant 1 : index
    %c4_26 = arith.constant 4 : index
    %72 = memref.load %arg1[%c1_25, %c4_26] : memref<5x5xf32, #tpu.memory_space<smem>>
    %73 = vector.extract_strided_slice %17 {offsets = [4, 0], sizes = [1, 128], strides = [1, 1]} : vector<5x128xf32> to vector<1x128xf32>
    %74 = vector.broadcast %72 : f32 to vector<1x128xf32>
    %75 = arith.mulf %74, %73 : vector<1x128xf32>
    %76 = arith.addf %71, %75 : vector<1x128xf32>
    %c1_i32 = arith.constant 1 : i32
    %77 = vector.broadcast %c1_i32 : i32 to vector<1x128xi32>
    %78 = arith.cmpi eq, %18, %77 : vector<1x128xi32>
    %cst_27 = arith.constant 0.000000e+00 : f32
    %79 = vector.broadcast %cst_27 : f32 to vector<1x128xf32>
    %80 = arith.select %78, %76, %79 : vector<1x128xi1>, vector<1x128xf32>
    %81 = arith.addf %50, %80 : vector<1x128xf32>
    %cst_28 = arith.constant 0.000000e+00 : f32
    %82 = vector.broadcast %cst_28 : f32 to vector<1x128xf32>
    %c2_29 = arith.constant 2 : index
    %c0_30 = arith.constant 0 : index
    %83 = memref.load %arg1[%c2_29, %c0_30] : memref<5x5xf32, #tpu.memory_space<smem>>
    %84 = vector.extract_strided_slice %17 {offsets = [0, 0], sizes = [1, 128], strides = [1, 1]} : vector<5x128xf32> to vector<1x128xf32>
    %85 = vector.broadcast %83 : f32 to vector<1x128xf32>
    %86 = arith.mulf %85, %84 : vector<1x128xf32>
    %87 = arith.addf %82, %86 : vector<1x128xf32>
    %c2_31 = arith.constant 2 : index
    %c1_32 = arith.constant 1 : index
    %88 = memref.load %arg1[%c2_31, %c1_32] : memref<5x5xf32, #tpu.memory_space<smem>>
    %89 = vector.extract_strided_slice %17 {offsets = [1, 0], sizes = [1, 128], strides = [1, 1]} : vector<5x128xf32> to vector<1x128xf32>
    %90 = vector.broadcast %88 : f32 to vector<1x128xf32>
    %91 = arith.mulf %90, %89 : vector<1x128xf32>
    %92 = arith.addf %87, %91 : vector<1x128xf32>
    %c2_33 = arith.constant 2 : index
    %c2_34 = arith.constant 2 : index
    %93 = memref.load %arg1[%c2_33, %c2_34] : memref<5x5xf32, #tpu.memory_space<smem>>
    %94 = vector.extract_strided_slice %17 {offsets = [2, 0], sizes = [1, 128], strides = [1, 1]} : vector<5x128xf32> to vector<1x128xf32>
    %95 = vector.broadcast %93 : f32 to vector<1x128xf32>
    %96 = arith.mulf %95, %94 : vector<1x128xf32>
    %97 = arith.addf %92, %96 : vector<1x128xf32>
    %c2_35 = arith.constant 2 : index
    %c3_36 = arith.constant 3 : index
    %98 = memref.load %arg1[%c2_35, %c3_36] : memref<5x5xf32, #tpu.memory_space<smem>>
    %99 = vector.extract_strided_slice %17 {offsets = [3, 0], sizes = [1, 128], strides = [1, 1]} : vector<5x128xf32> to vector<1x128xf32>
    %100 = vector.broadcast %98 : f32 to vector<1x128xf32>
    %101 = arith.mulf %100, %99 : vector<1x128xf32>
    %102 = arith.addf %97, %101 : vector<1x128xf32>
    %c2_37 = arith.constant 2 : index
    %c4_38 = arith.constant 4 : index
    %103 = memref.load %arg1[%c2_37, %c4_38] : memref<5x5xf32, #tpu.memory_space<smem>>
    %104 = vector.extract_strided_slice %17 {offsets = [4, 0], sizes = [1, 128], strides = [1, 1]} : vector<5x128xf32> to vector<1x128xf32>
    %105 = vector.broadcast %103 : f32 to vector<1x128xf32>
    %106 = arith.mulf %105, %104 : vector<1x128xf32>
    %107 = arith.addf %102, %106 : vector<1x128xf32>
    %c2_i32 = arith.constant 2 : i32
    %108 = vector.broadcast %c2_i32 : i32 to vector<1x128xi32>
    %109 = arith.cmpi eq, %18, %108 : vector<1x128xi32>
    %cst_39 = arith.constant 0.000000e+00 : f32
    %110 = vector.broadcast %cst_39 : f32 to vector<1x128xf32>
    %111 = arith.select %109, %107, %110 : vector<1x128xi1>, vector<1x128xf32>
    %112 = arith.addf %81, %111 : vector<1x128xf32>
    %cst_40 = arith.constant 0.000000e+00 : f32
    %113 = vector.broadcast %cst_40 : f32 to vector<1x128xf32>
    %c3_41 = arith.constant 3 : index
    %c0_42 = arith.constant 0 : index
    %114 = memref.load %arg1[%c3_41, %c0_42] : memref<5x5xf32, #tpu.memory_space<smem>>
    %115 = vector.extract_strided_slice %17 {offsets = [0, 0], sizes = [1, 128], strides = [1, 1]} : vector<5x128xf32> to vector<1x128xf32>
    %116 = vector.broadcast %114 : f32 to vector<1x128xf32>
    %117 = arith.mulf %116, %115 : vector<1x128xf32>
    %118 = arith.addf %113, %117 : vector<1x128xf32>
    %c3_43 = arith.constant 3 : index
    %c1_44 = arith.constant 1 : index
    %119 = memref.load %arg1[%c3_43, %c1_44] : memref<5x5xf32, #tpu.memory_space<smem>>
    %120 = vector.extract_strided_slice %17 {offsets = [1, 0], sizes = [1, 128], strides = [1, 1]} : vector<5x128xf32> to vector<1x128xf32>
    %121 = vector.broadcast %119 : f32 to vector<1x128xf32>
    %122 = arith.mulf %121, %120 : vector<1x128xf32>
    %123 = arith.addf %118, %122 : vector<1x128xf32>
    %c3_45 = arith.constant 3 : index
    %c2_46 = arith.constant 2 : index
    %124 = memref.load %arg1[%c3_45, %c2_46] : memref<5x5xf32, #tpu.memory_space<smem>>
    %125 = vector.extract_strided_slice %17 {offsets = [2, 0], sizes = [1, 128], strides = [1, 1]} : vector<5x128xf32> to vector<1x128xf32>
    %126 = vector.broadcast %124 : f32 to vector<1x128xf32>
    %127 = arith.mulf %126, %125 : vector<1x128xf32>
    %128 = arith.addf %123, %127 : vector<1x128xf32>
    %c3_47 = arith.constant 3 : index
    %c3_48 = arith.constant 3 : index
    %129 = memref.load %arg1[%c3_47, %c3_48] : memref<5x5xf32, #tpu.memory_space<smem>>
    %130 = vector.extract_strided_slice %17 {offsets = [3, 0], sizes = [1, 128], strides = [1, 1]} : vector<5x128xf32> to vector<1x128xf32>
    %131 = vector.broadcast %129 : f32 to vector<1x128xf32>
    %132 = arith.mulf %131, %130 : vector<1x128xf32>
    %133 = arith.addf %128, %132 : vector<1x128xf32>
    %c3_49 = arith.constant 3 : index
    %c4_50 = arith.constant 4 : index
    %134 = memref.load %arg1[%c3_49, %c4_50] : memref<5x5xf32, #tpu.memory_space<smem>>
    %135 = vector.extract_strided_slice %17 {offsets = [4, 0], sizes = [1, 128], strides = [1, 1]} : vector<5x128xf32> to vector<1x128xf32>
    %136 = vector.broadcast %134 : f32 to vector<1x128xf32>
    %137 = arith.mulf %136, %135 : vector<1x128xf32>
    %138 = arith.addf %133, %137 : vector<1x128xf32>
    %c3_i32 = arith.constant 3 : i32
    %139 = vector.broadcast %c3_i32 : i32 to vector<1x128xi32>
    %140 = arith.cmpi eq, %18, %139 : vector<1x128xi32>
    %cst_51 = arith.constant 0.000000e+00 : f32
    %141 = vector.broadcast %cst_51 : f32 to vector<1x128xf32>
    %142 = arith.select %140, %138, %141 : vector<1x128xi1>, vector<1x128xf32>
    %143 = arith.addf %112, %142 : vector<1x128xf32>
    %cst_52 = arith.constant 0.000000e+00 : f32
    %144 = vector.broadcast %cst_52 : f32 to vector<1x128xf32>
    %c4_53 = arith.constant 4 : index
    %c0_54 = arith.constant 0 : index
    %145 = memref.load %arg1[%c4_53, %c0_54] : memref<5x5xf32, #tpu.memory_space<smem>>
    %146 = vector.extract_strided_slice %17 {offsets = [0, 0], sizes = [1, 128], strides = [1, 1]} : vector<5x128xf32> to vector<1x128xf32>
    %147 = vector.broadcast %145 : f32 to vector<1x128xf32>
    %148 = arith.mulf %147, %146 : vector<1x128xf32>
    %149 = arith.addf %144, %148 : vector<1x128xf32>
    %c4_55 = arith.constant 4 : index
    %c1_56 = arith.constant 1 : index
    %150 = memref.load %arg1[%c4_55, %c1_56] : memref<5x5xf32, #tpu.memory_space<smem>>
    %151 = vector.extract_strided_slice %17 {offsets = [1, 0], sizes = [1, 128], strides = [1, 1]} : vector<5x128xf32> to vector<1x128xf32>
    %152 = vector.broadcast %150 : f32 to vector<1x128xf32>
    %153 = arith.mulf %152, %151 : vector<1x128xf32>
    %154 = arith.addf %149, %153 : vector<1x128xf32>
    %c4_57 = arith.constant 4 : index
    %c2_58 = arith.constant 2 : index
    %155 = memref.load %arg1[%c4_57, %c2_58] : memref<5x5xf32, #tpu.memory_space<smem>>
    %156 = vector.extract_strided_slice %17 {offsets = [2, 0], sizes = [1, 128], strides = [1, 1]} : vector<5x128xf32> to vector<1x128xf32>
    %157 = vector.broadcast %155 : f32 to vector<1x128xf32>
    %158 = arith.mulf %157, %156 : vector<1x128xf32>
    %159 = arith.addf %154, %158 : vector<1x128xf32>
    %c4_59 = arith.constant 4 : index
    %c3_60 = arith.constant 3 : index
    %160 = memref.load %arg1[%c4_59, %c3_60] : memref<5x5xf32, #tpu.memory_space<smem>>
    %161 = vector.extract_strided_slice %17 {offsets = [3, 0], sizes = [1, 128], strides = [1, 1]} : vector<5x128xf32> to vector<1x128xf32>
    %162 = vector.broadcast %160 : f32 to vector<1x128xf32>
    %163 = arith.mulf %162, %161 : vector<1x128xf32>
    %164 = arith.addf %159, %163 : vector<1x128xf32>
    %c4_61 = arith.constant 4 : index
    %c4_62 = arith.constant 4 : index
    %165 = memref.load %arg1[%c4_61, %c4_62] : memref<5x5xf32, #tpu.memory_space<smem>>
    %166 = vector.extract_strided_slice %17 {offsets = [4, 0], sizes = [1, 128], strides = [1, 1]} : vector<5x128xf32> to vector<1x128xf32>
    %167 = vector.broadcast %165 : f32 to vector<1x128xf32>
    %168 = arith.mulf %167, %166 : vector<1x128xf32>
    %169 = arith.addf %164, %168 : vector<1x128xf32>
    %c4_i32 = arith.constant 4 : i32
    %170 = vector.broadcast %c4_i32 : i32 to vector<1x128xi32>
    %171 = arith.cmpi eq, %18, %170 : vector<1x128xi32>
    %cst_63 = arith.constant 0.000000e+00 : f32
    %172 = vector.broadcast %cst_63 : f32 to vector<1x128xf32>
    %173 = arith.select %171, %169, %172 : vector<1x128xi1>, vector<1x128xf32>
    %174 = arith.addf %143, %173 : vector<1x128xf32>
    %c0_64 = arith.constant 0 : index
    %c0_65 = arith.constant 0 : index
    %175 = vector.load %arg4[%c0_64, %c0_65] : memref<1x128xf32, #tpu.memory_space<vmem>>, vector<1x128xf32>
    tpu.vector_store %arg4[%c0_64, %c0_65], %174 {strides = array<i32>} : memref<1x128xf32, #tpu.memory_space<vmem>>, vector<1x128xf32>,
    return
  }
  func.func @transform_0(%arg0: i32) -> (i32, i32) {
    %c0_i32 = arith.constant 0 : i32
    %c0_i32_0 = arith.constant 0 : i32
    %c0_i32_1 = arith.constant 0 : i32
    return %c0_i32, %c0_i32_0 : i32, i32
  }
  func.func @transform_1(%arg0: i32) -> (i32, i32) {
    %c0_i32 = arith.constant 0 : i32
    %c0_i32_0 = arith.constant 0 : i32
    return %c0_i32, %arg0 : i32, i32
  }
  func.func @transform_2(%arg0: i32) -> (i32, i32) {
    %c0_i32 = arith.constant 0 : i32
    %c0_i32_0 = arith.constant 0 : i32
    return %c0_i32, %arg0 : i32, i32
  }
  func.func @transform_3(%arg0: i32) -> (i32, i32) {
    %c0_i32 = arith.constant 0 : i32
    %c0_i32_0 = arith.constant 0 : i32
    return %c0_i32, %arg0 : i32, i32
  }
}

</mosaic_0001>

<llo_original>
// kernel: tpu_custom_call.1
$region0: #{tpu_custom_call.1}
  #allocation0 [shape = 'u32[]', space=smem, size = 0x4, offset = 0x4, fixed_abs, tag = 'smem constant byte address 0x4 - core index']
  #allocation1 [shape = 'u32[72,128]{1,0:T(1,128)}', space=vmem, size = 0x9000, scoped, tag = 'internal scratch']
  %s0 = inlined_call_operand.hbm [shape: f32[5,5], index: 0, kind: input, shape index: {}]
  %s1 = inlined_call_operand.hbm [shape: f32[5,128], index: 1, kind: input, shape index: {}]
  %s2 = inlined_call_operand.vmem [shape: s32[1,128], index: 2, kind: input, shape index: {}]
  %s3 = inlined_call_operand.hbm [shape: f32[1,128], index: 3, kind: output, shape index: {}]
  %s4 = sld [smem:[#allocation0]]
  $region30: #{tpu_custom_call.1} parent=0
    _
  %s6 = ssub.s32 1, %s4
  %s7 = scalar_select 0, %s6, %s4
  $region1: #{tpu_custom_call.1} parent=0
    #allocation2 [shape = 'u8[4096]{0}', space=smem, size = 0x1000, scoped, tag = 'input window, operand 0, single buffered']
    #allocation3 [shape = 's32[1]{0}', space=sflag, size = 0x4, scoped, tag = 'scoped memory for tpu_custom_call.1']
    #allocation4 [shape = 's32[1]{0}', space=sflag, size = 0x4, scoped, tag = 'scoped memory for tpu_custom_call.1']
    #allocation5 [shape = 's32[1]{0}', space=sflag, size = 0x4, scoped, tag = 'scoped memory for tpu_custom_call.1']
    #allocation6 [shape = 'u8[4096]{0}', space=vmem, size = 0x1000, scoped, tag = 'input window, operand 1, single buffered']
    #allocation7 [shape = 'u8[512]{0}', space=vmem, size = 0x400, scoped, tag = 'output window, operand 0, single buffered']
    %8 = vsyncpa [#allocation5], 0
    %9 = vsyncpa [#allocation3], 0
    %10 = vsyncpa [#allocation4], 0
    // Predicated region
    $region2: #{tpu_custom_call.1} parent=1 // pred_check
      _
    $region3: #{tpu_custom_call.1} parent=1 // pred_check_branch
      %12 = sbr.rel (0) target = $region5
    $region4: #{tpu_custom_call.1} parent=1 // pred_region
      %14 = vsyncadd [#allocation5], 0
      %s16 = sshll.u32 %s0, 4
      %s17 = int_to_ptr.hbm [resolvable:$true] %s16
      %19 = dma.hbm_to_smem %s17, 128, [#allocation2], [#allocation5]
    $region5: #{tpu_custom_call.1} parent=1 // pred_fallthru
      _
    // Predicated region
    $region6: #{tpu_custom_call.1} parent=1 // pred_check
      _
    $region7: #{tpu_custom_call.1} parent=1 // pred_check_branch
      %21 = sbr.rel (0) target = $region9
    $region8: #{tpu_custom_call.1} parent=1 // pred_region
      %23 = vsyncadd [#allocation3], 0
      %s25 = sshll.u32 %s1, 4
      %s26 = int_to_ptr.hbm [resolvable:$true] %s25
      %s27 = sshll.u32 [#allocation6], 4
      %s28 = int_to_ptr.vmem [resolvable:$true] %s27
      %30 = dma.hbm_to_vmem [thread:$0]  %s26, 128, %s28, [#allocation3]
    $region9: #{tpu_custom_call.1} parent=1 // pred_fallthru
      _
    // Predicated region
    $region10: #{tpu_custom_call.1} parent=1 // pred_check
      _
    $region11: #{tpu_custom_call.1} parent=1 // pred_check_branch
      %32 = sbr.rel (0) target = $region13
    $region12: #{tpu_custom_call.1} parent=1 // pred_region
      _
    $region13: #{tpu_custom_call.1} parent=1 // pred_fallthru
      _
    // Predicated region
    $region14: #{tpu_custom_call.1} parent=1 // pred_check
      _
    $region15: #{tpu_custom_call.1} parent=1 // pred_check_branch
      %34 = sbr.rel (0) target = $region17
    $region16: #{tpu_custom_call.1} parent=1 // pred_region
      %36 = dma.done [#allocation5], 128
    $region17: #{tpu_custom_call.1} parent=1 // pred_fallthru
      _
    // Predicated region
    $region18: #{tpu_custom_call.1} parent=1 // pred_check
      _
    $region19: #{tpu_custom_call.1} parent=1 // pred_check_branch
      %38 = sbr.rel (0) target = $region21
    $region20: #{tpu_custom_call.1} parent=1 // pred_region
      %40 = dma.done [#allocation3], 128
    $region21: #{tpu_custom_call.1} parent=1 // pred_fallthru
      _
    %41 = sfence
    %v42 = vld [vmem:[#allocation6] sm:$0x1f]
    %vm43 = vcmask 1044480
    %v44 = vsel %vm43, %v42, -inf
    %v45 = vrot.slane %v44, 4
    %v46 = vmax.f32 %v44, %v45
    %v47 = vrot.slane %v46, 2
    %v48 = vmax.f32 %v46, %v47
    %v49 = vrot.slane %v48, 1
    %v50 = vmax.f32 %v48, %v49
    %v51 = vsub.f32 %v42, %v50
    %v52 = vmul.f32 %v51, 1.442695
    %v53 = vpow.pop %v52
    %v54 = vsel %vm43, %v53, 0.0
    %v55 = vrot.slane %v54, 4
    %v56 = vadd.f32 %v54, %v55
    %v57 = vrot.slane %v56, 2
    %v58 = vadd.f32 %v56, %v57
    %v59 = vrot.slane %v58, 1
    %v60 = vadd.f32 %v58, %v59
    %v61 = vrcp.pop %v60
    %v62 = vmul.f32 %v60, %v61
    %v63 = vsub.f32 1.0, %v62
    %v64 = vmul.f32 %v61, %v63
    %v65 = vadd.f32 %v61, %v64
    %vm66 = vweird.f32 %v60
    %vm67 = vweird.f32 %v61
    %vm68 = vmor %vm66, %vm67
    %v69 = vsel %vm68, %v61, %v65
    %v70 = vand.u32 2147483647, %v60
    %vm71 = vcmp.eq.f32.partialorder %v70, 8.507059e+37
    %v72 = vand.u32 %v60, 2147483648
    %v73 = vor.u32 1.1754944e-38, %v72
    %v74 = vsel %vm71, %v73, %v69
    %v75 = vmul.f32 %v53, %v74
    %v76 = vsub.f32 1.0, %v75
    %v77 = vadd.f32 %v76, 1e-09
    %v78 = vlog2.pop %v77
    %v79 = vmul.f32 %v78, 0.6931472
    %v80 = vsub.f32 0.0, %v79
    %v81 = vld [vmem:[%s2] sm:$0x1]
    %s82 = sld [smem:[#allocation2]]
    %v83 = vstv %s82
    %v84 = vmul.f32 %v83, %v80
    %v85 = vadd.f32 %v84, 0.0
    %s86 = sld [smem:[#allocation2 + $0x1]]
    %v87 = vstv %s86
    %v88 = vmul.f32 %v87, %v80
    %v90 = vrot.slane %v88, 1
    %v92 = vadd.f32 %v85, %v90
    %s93 = sld [smem:[#allocation2 + $0x2]]
    %v94 = vstv %s93
    %v95 = vmul.f32 %v94, %v80
    %v97 = vrot.slane %v95, 2
    %v99 = vadd.f32 %v92, %v97
    %s100 = sld [smem:[#allocation2 + $0x3]]
    %v101 = vstv %s100
    %v102 = vmul.f32 %v101, %v80
    %v104 = vrot.slane %v102, 3
    %v106 = vadd.f32 %v99, %v104
    %s107 = sld [smem:[#allocation2 + $0x4]]
    %v108 = vstv %s107
    %v109 = vmul.f32 %v108, %v80
    %v111 = vrot.slane %v109, 4
    %v113 = vadd.f32 %v106, %v111
    %vm114 = vcmp.eq.s32.totalorder %v81, 0
    %v115 = vsel %vm114, %v113, 0.0
    %v116 = vadd.f32 %v115, 0.0
    %s117 = sld [smem:[#allocation2 + $0x80]]
    %v118 = vstv %s117
    %v119 = vmul.f32 %v118, %v80
    %v120 = vadd.f32 %v119, 0.0
    %s121 = sld [smem:[#allocation2 + $0x81]]
    %v122 = vstv %s121
    %v123 = vmul.f32 %v122, %v80
    %v125 = vrot.slane %v123, 1
    %v127 = vadd.f32 %v120, %v125
    %s128 = sld [smem:[#allocation2 + $0x82]]
    %v129 = vstv %s128
    %v130 = vmul.f32 %v129, %v80
    %v132 = vrot.slane %v130, 2
    %v134 = vadd.f32 %v127, %v132
    %s135 = sld [smem:[#allocation2 + $0x83]]
    %v136 = vstv %s135
    %v137 = vmul.f32 %v136, %v80
    %v139 = vrot.slane %v137, 3
    %v141 = vadd.f32 %v134, %v139
    %s142 = sld [smem:[#allocation2 + $0x84]]
    %v143 = vstv %s142
    %v144 = vmul.f32 %v143, %v80
    %v146 = vrot.slane %v144, 4
    %v148 = vadd.f32 %v141, %v146
    %vm149 = vcmp.eq.s32.totalorder %v81, 1
    %v150 = vsel %vm149, %v148, 0.0
    %v151 = vadd.f32 %v116, %v150
    %s152 = sld [smem:[#allocation2 + $0x100]]
    %v153 = vstv %s152
    %v154 = vmul.f32 %v153, %v80
    %v155 = vadd.f32 %v154, 0.0
    %s156 = sld [smem:[#allocation2 + $0x101]]
    %v157 = vstv %s156
    %v158 = vmul.f32 %v157, %v80
    %v160 = vrot.slane %v158, 1
    %v162 = vadd.f32 %v155, %v160
    %s163 = sld [smem:[#allocation2 + $0x102]]
    %v164 = vstv %s163
    %v165 = vmul.f32 %v164, %v80
    %v167 = vrot.slane %v165, 2
    %v169 = vadd.f32 %v162, %v167
    %s170 = sld [smem:[#allocation2 + $0x103]]
    %v171 = vstv %s170
    %v172 = vmul.f32 %v171, %v80
    %v174 = vrot.slane %v172, 3
    %v176 = vadd.f32 %v169, %v174
    %s177 = sld [smem:[#allocation2 + $0x104]]
    %v178 = vstv %s177
    %v179 = vmul.f32 %v178, %v80
    %v181 = vrot.slane %v179, 4
    %v183 = vadd.f32 %v176, %v181
    %vm184 = vcmp.eq.s32.totalorder %v81, 2
    %v185 = vsel %vm184, %v183, 0.0
    %v186 = vadd.f32 %v151, %v185
    %s187 = sld [smem:[#allocation2 + $0x180]]
    %v188 = vstv %s187
    %v189 = vmul.f32 %v188, %v80
    %v190 = vadd.f32 %v189, 0.0
    %s191 = sld [smem:[#allocation2 + $0x181]]
    %v192 = vstv %s191
    %v193 = vmul.f32 %v192, %v80
    %v195 = vrot.slane %v193, 1
    %v197 = vadd.f32 %v190, %v195
    %s198 = sld [smem:[#allocation2 + $0x182]]
    %v199 = vstv %s198
    %v200 = vmul.f32 %v199, %v80
    %v202 = vrot.slane %v200, 2
    %v204 = vadd.f32 %v197, %v202
    %s205 = sld [smem:[#allocation2 + $0x183]]
    %v206 = vstv %s205
    %v207 = vmul.f32 %v206, %v80
    %v209 = vrot.slane %v207, 3
    %v211 = vadd.f32 %v204, %v209
    %s212 = sld [smem:[#allocation2 + $0x184]]
    %v213 = vstv %s212
    %v214 = vmul.f32 %v213, %v80
    %v216 = vrot.slane %v214, 4
    %v218 = vadd.f32 %v211, %v216
    %vm219 = vcmp.eq.s32.totalorder %v81, 3
    %v220 = vsel %vm219, %v218, 0.0
    %v221 = vadd.f32 %v186, %v220
    %s222 = sld [smem:[#allocation2 + $0x200]]
    %v223 = vstv %s222
    %v224 = vmul.f32 %v223, %v80
    %v225 = vadd.f32 %v224, 0.0
    %s226 = sld [smem:[#allocation2 + $0x201]]
    %v227 = vstv %s226
    %v228 = vmul.f32 %v227, %v80
    %v230 = vrot.slane %v228, 1
    %v232 = vadd.f32 %v225, %v230
    %s233 = sld [smem:[#allocation2 + $0x202]]
    %v234 = vstv %s233
    %v235 = vmul.f32 %v234, %v80
    %v237 = vrot.slane %v235, 2
    %v239 = vadd.f32 %v232, %v237
    %s240 = sld [smem:[#allocation2 + $0x203]]
    %v241 = vstv %s240
    %v242 = vmul.f32 %v241, %v80
    %v244 = vrot.slane %v242, 3
    %v246 = vadd.f32 %v239, %v244
    %s247 = sld [smem:[#allocation2 + $0x204]]
    %v248 = vstv %s247
    %v249 = vmul.f32 %v248, %v80
    %v251 = vrot.slane %v249, 4
    %v253 = vadd.f32 %v246, %v251
    %vm254 = vcmp.eq.s32.totalorder %v81, 4
    %v255 = vsel %vm254, %v253, 0.0
    %v256 = vadd.f32 %v221, %v255
    %257 = vst [vmem:[#allocation7] sm:$0x1] %v256
    // Predicated region
    $region22: #{tpu_custom_call.1} parent=1 // pred_check
      _
    $region23: #{tpu_custom_call.1} parent=1 // pred_check_branch
      %259 = sbr.rel (0) target = $region25
    $region24: #{tpu_custom_call.1} parent=1 // pred_region
      %261 = vsyncadd [#allocation4], 0
      %s263 = sshll.u32 [#allocation7], 4
      %s264 = int_to_ptr.vmem [resolvable:$true] %s263
      %s265 = sshll.u32 %s3, 4
      %s266 = int_to_ptr.hbm [resolvable:$true] %s265
      %268 = dma.vmem_to_hbm [thread:$0]  %s264, 16, %s266, [#allocation4]
    $region25: #{tpu_custom_call.1} parent=1 // pred_fallthru
      _
    // Predicated region
    $region26: #{tpu_custom_call.1} parent=1 // pred_check
      _
    $region27: #{tpu_custom_call.1} parent=1 // pred_check_branch
      %270 = sbr.rel (0) target = $region29
    $region28: #{tpu_custom_call.1} parent=1 // pred_region
      %272 = dma.done [#allocation4], 16
    $region29: #{tpu_custom_call.1} parent=1 // pred_fallthru
      _
    %273 = vsyncpa [#allocation3], 1
    %274 = vsyncpa [#allocation4], 1
    %275 = vsyncpa [#allocation5], 1

</llo_original>
